<compile_context>
chip_gen: v7x
topology: tpu7x:2x2x1
jax: 0.10.0
libtpu: 0.0.40
codegen_flags: <defaults>
</compile_context>

<pallas_src>
import jax
import jax.numpy as jnp
from jax.experimental import pallas as pl
from jax.experimental.pallas import tpu as pltpu


def _round_up(x, m):
    return (x + m - 1) // m * m


def _sage_layer_kernel(dst_ref, efeat_ref, inv_ref, nfeat_ref,
                       wm_ref, bm_ref, wah_ref, wan_ref, ba_ref,
                       out_ref, acc_ref):
    """One (N-tile, E-tile) grid step of a SAGELayer."""
    e = pl.program_id(1)
    n_t, _ = acc_ref.shape
    e_t = dst_ref.shape[1]

    # --- one-hot destination tile, built in-registers (no [N, E] in HBM) ---
    row_ids = (jax.lax.broadcasted_iota(jnp.int32, (n_t, e_t), 0)
               + pl.program_id(0) * n_t)                       # node id per row
    adj = (row_ids == dst_ref[...]).astype(jnp.bfloat16)       # [n_t, e_t] 0/1

    # --- aggregate raw edge-side features: sum_{e: dst(e)=n} [h_src ; e_h] ---
    partial = jnp.dot(adj, efeat_ref[...],
                      preferred_element_type=jnp.float32)      # [n_t, k_pad]

    @pl.when(e == 0)
    def _init():
        acc_ref[...] = partial

    @pl.when(e > 0)
    def _accum():
        acc_ref[...] += partial

    @pl.when(e == pl.num_programs(1) - 1)
    def _finalize():
        inv = inv_ref[...]                                     # [n_t, 1] 1/deg (0 if isolated)
        flag = (inv > 0.0).astype(jnp.float32)                 # has-in-edge mask
        mean = (acc_ref[...] * inv).astype(jnp.bfloat16)       # [n_t, k_pad]
        # W_msg applied once in node space (linear => same as per-edge W_msg).
        h_neigh = (jnp.dot(mean, wm_ref[...],
                           preferred_element_type=jnp.float32)
                   + flag * bm_ref[...])                       # [n_t, dout_pad]
        z = (jnp.dot(nfeat_ref[...], wah_ref[...],
                     preferred_element_type=jnp.float32)
             + jnp.dot(h_neigh.astype(jnp.bfloat16), wan_ref[...],
                       preferred_element_type=jnp.float32)
             + ba_ref[...])
        out_ref[...] = jnp.maximum(z, 0.0)


def sage_layer_forward(nf, ef, src, dst, W_msg, b_msg, W_apply, b_apply,
                       *, n_tile=256, e_tile=512):
    """One SAGELayer forward. nf: [N, ndim_in], ef: [E, edims] (2-D slabs)."""
    N, ndim_in = nf.shape
    E, edims = ef.shape
    ndim_out = W_msg.shape[0]
    K = ndim_in + edims

    # --- tile / pad sizes (lane dims padded to 128 -> lane-dense stores) ---
    n_t = min(n_tile, _round_up(N, 8))
    n_pad = _round_up(N, n_t)
    e_t = min(e_tile, _round_up(E, 128))
    e_pad = _round_up(E, e_t)
    k_pad = _round_up(K, 128)
    din_pad = _round_up(ndim_in, 128)
    dout_pad = _round_up(ndim_out, 128)

    f32 = jnp.float32
    nf = nf.astype(f32)
    ef = ef.astype(f32)

    # edge-side features: gather src node feats, concat edge feats (wrapper glue)
    edge_feat = jnp.concatenate([jnp.take(nf, src, axis=0), ef], axis=-1)   # [E, K]
    edge_feat = jnp.pad(edge_feat,
                        ((0, e_pad - E), (0, k_pad - K))).astype(jnp.bfloat16)

    # destination ids, padded with -1 so padded edges never match a node
    dst_pad = jnp.full((1, e_pad), -1, dtype=jnp.int32).at[0, :E].set(
        dst.astype(jnp.int32))

    # 1/in-degree (0 for isolated nodes), precomputed once in the wrapper
    counts = jax.ops.segment_sum(jnp.ones((E,), f32), dst, num_segments=N)
    inv_counts = jnp.where(counts > 0, 1.0 / jnp.maximum(counts, 1.0), 0.0)
    inv_counts = jnp.pad(inv_counts, (0, n_pad - N)).reshape(n_pad, 1)

    nf_pad = jnp.pad(nf, ((0, n_pad - N),
                          (0, din_pad - ndim_in))).astype(jnp.bfloat16)

    # weights, split/transposed so the kernel only runs plain [M,K]@[K,N] matmuls
    WmT = jnp.pad(W_msg.astype(f32).T,
                  ((0, k_pad - K), (0, dout_pad - ndim_out))).astype(jnp.bfloat16)
    bm = jnp.pad(b_msg.astype(f32), (0, dout_pad - ndim_out)).reshape(1, dout_pad)
    WaT_h = jnp.pad(W_apply[:, :ndim_in].astype(f32).T,
                    ((0, din_pad - ndim_in),
                     (0, dout_pad - ndim_out))).astype(jnp.bfloat16)
    WaT_n = jnp.pad(W_apply[:, ndim_in:].astype(f32).T,
                    ((0, dout_pad - ndim_out),
                     (0, dout_pad - ndim_out))).astype(jnp.bfloat16)
    ba = jnp.pad(b_apply.astype(f32), (0, dout_pad - ndim_out)).reshape(1, dout_pad)

    grid = (n_pad // n_t, e_pad // e_t)
    in_specs = [
        pl.BlockSpec((1, e_t), lambda i, e: (0, e)),               # dst ids
        pl.BlockSpec((e_t, k_pad), lambda i, e: (e, 0)),           # edge features
        pl.BlockSpec((n_t, 1), lambda i, e: (i, 0)),               # 1/deg
        pl.BlockSpec((n_t, din_pad), lambda i, e: (i, 0)),         # node features
        pl.BlockSpec((k_pad, dout_pad), lambda i, e: (0, 0)),      # W_msg^T (resident)
        pl.BlockSpec((1, dout_pad), lambda i, e: (0, 0)),          # b_msg
        pl.BlockSpec((din_pad, dout_pad), lambda i, e: (0, 0)),    # W_apply node part^T
        pl.BlockSpec((dout_pad, dout_pad), lambda i, e: (0, 0)),   # W_apply neigh part^T
        pl.BlockSpec((1, dout_pad), lambda i, e: (0, 0)),          # b_apply
    ]
    out_spec = pl.BlockSpec((n_t, dout_pad), lambda i, e: (i, 0))

    out = pl.pallas_call(
        _sage_layer_kernel,
        out_shape=jax.ShapeDtypeStruct((n_pad, dout_pad), jnp.float32),
        grid_spec=pltpu.PrefetchScalarGridSpec(
            num_scalar_prefetch=0,
            grid=grid,
            in_specs=in_specs,
            out_specs=out_spec,
            scratch_shapes=[pltpu.VMEM((n_t, k_pad), jnp.float32)],
        ),
        compiler_params=pltpu.CompilerParams(
            dimension_semantics=("parallel", "arbitrary"),
            vmem_limit_bytes=64 * 1024 * 1024,
        ),
    )(dst_pad, edge_feat, inv_counts, nf_pad, WmT, bm, WaT_h, WaT_n, ba)

    return out[:N, :ndim_out]


def sage_forward(nfeats, efeats, src, dst, params):
    """Full SAGE forward. nfeats: [N, 1, ndim_in], efeats: [E, 1, edims]."""
    nf = nfeats[:, 0, :]
    ef = efeats[:, 0, :]
    h = sage_layer_forward(nf, ef, src, dst, *params[0])
    # TODO(synk): nn.Dropout between layers is training-mode only; inference forward is identity.
    h = sage_layer_forward(h, ef, src, dst, *params[1])
    return h   # == nfeats.sum(1) because the middle axis has size 1


# ----------------------------- pure-JAX reference -----------------------------
def _sage_layer_ref(nf, ef, src, dst, W_msg, b_msg, W_apply, b_apply):
    msg = jnp.concatenate([nf[src], ef], axis=-1) @ W_msg.T + b_msg
    N = nf.shape[0]
    summed = jax.ops.segment_sum(msg, dst, num_segments=N)
    cnt = jax.ops.segment_sum(jnp.ones((msg.shape[0],), jnp.float32), dst,
                              num_segments=N)
    mean = summed / jnp.maximum(cnt, 1.0)[:, None]
    z = jnp.concatenate([nf, mean], axis=-1) @ W_apply.T + b_apply
    return jnp.maximum(z, 0.0)


def _sage_ref(nfeats, efeats, src, dst, params):
    nf = nfeats[:, 0, :]
    ef = efeats[:, 0, :]
    h = _sage_layer_ref(nf, ef, src, dst, *params[0])
    h = _sage_layer_ref(h, ef, src, dst, *params[1])
    return h


if __name__ == "__main__":
    key = jax.random.PRNGKey(0)
    N, E = 16, 48
    ndim_in, edim, ndim_out, hidden = 32, 16, 32, 128

    ks = jax.random.split(key, 12)
    nfeats = jax.random.normal(ks[0], (N, 1, ndim_in), dtype=jnp.float32)
    efeats = jax.random.normal(ks[1], (E, 1, edim), dtype=jnp.float32)
    src = jax.random.randint(ks[2], (E,), 0, N, dtype=jnp.int32)
    dst = jax.random.randint(ks[3], (E,), 0, N, dtype=jnp.int32)

    def lin(kw, kb, dout, din):
        return (0.1 * jax.random.normal(kw, (dout, din), dtype=jnp.float32),
                0.1 * jax.random.normal(kb, (dout,), dtype=jnp.float32))

    W1m, b1m = lin(ks[4], ks[5], hidden, ndim_in + edim)
    W1a, b1a = lin(ks[6], ks[7], hidden, ndim_in + hidden)
    W2m, b2m = lin(ks[8], ks[9], ndim_out, hidden + edim)
    W2a, b2a = lin(ks[10], ks[11], ndim_out, hidden + ndim_out)
    params = [(W1m, b1m, W1a, b1a), (W2m, b2m, W2a, b2a)]

    out = sage_forward(nfeats, efeats, src, dst, params)
    out = jax.block_until_ready(out)

    ref = _sage_ref(nfeats, efeats, src, dst, params)
    assert out.shape == (N, ndim_out)
    max_err = float(jnp.max(jnp.abs(out - ref)))
    assert jnp.allclose(out, ref, atol=5e-2, rtol=5e-2), max_err
    print("KERNEL_OK")
</pallas_src>

<mosaic_0001>
module attributes {stable_mosaic.version = 11 : i64} {
  func.func @_sage_layer_kernel(%arg0: i32, %arg1: i32, %arg2: memref<1x128xi32, #tpu.memory_space<vmem>>, %arg3: memref<128x128xbf16, #tpu.memory_space<vmem>>, %arg4: memref<16x1xf32, #tpu.memory_space<vmem>>, %arg5: memref<16x128xbf16, #tpu.memory_space<vmem>>, %arg6: memref<128x128xbf16, #tpu.memory_space<vmem>>, %arg7: memref<1x128xf32, #tpu.memory_space<vmem>>, %arg8: memref<128x128xbf16, #tpu.memory_space<vmem>>, %arg9: memref<128x128xbf16, #tpu.memory_space<vmem>>, %arg10: memref<1x128xf32, #tpu.memory_space<vmem>>, %arg11: memref<16x128xf32, #tpu.memory_space<vmem>>, %arg12: memref<16x128xf32, #tpu.memory_space<vmem>>) attributes {dimension_semantics = [#tpu.dimension_semantics<parallel>, #tpu.dimension_semantics<arbitrary>], iteration_bounds = array<i64: 1, 1>, scalar_prefetch = 0 : i64, scratch_operands = 1 : i64, tpu.core_type = #tpu.core_type<tc>, window_params = [{transform_indices = @transform_0, window_bounds = array<i64: 1, 128>}, {transform_indices = @transform_1, window_bounds = array<i64: 128, 128>}, {transform_indices = @transform_2, window_bounds = array<i64: 16, 1>}, {transform_indices = @transform_3, window_bounds = array<i64: 16, 128>}, {pipeline_mode = #tpu.pipeline_mode<synchronous>, transform_indices = @transform_4, window_bounds = array<i64: 128, 128>}, {pipeline_mode = #tpu.pipeline_mode<synchronous>, transform_indices = @transform_5, window_bounds = array<i64: 1, 128>}, {pipeline_mode = #tpu.pipeline_mode<synchronous>, transform_indices = @transform_6, window_bounds = array<i64: 128, 128>}, {pipeline_mode = #tpu.pipeline_mode<synchronous>, transform_indices = @transform_7, window_bounds = array<i64: 128, 128>}, {pipeline_mode = #tpu.pipeline_mode<synchronous>, transform_indices = @transform_8, window_bounds = array<i64: 1, 128>}, {transform_indices = @transform_9, window_bounds = array<i64: 16, 128>}]} {
    %0 = tpu.iota {dimensions = array<i32: 0>} : vector<16x128xi32>
    %c16_i32 = arith.constant 16 : i32
    %1 = arith.muli %arg0, %c16_i32 : i32
    %2 = vector.broadcast %1 : i32 to vector<16x128xi32>
    %3 = arith.addi %0, %2 : vector<16x128xi32>
    %c0 = arith.constant 0 : index
    %c0_0 = arith.constant 0 : index
    %4 = vector.load %arg2[%c0, %c0_0] : memref<1x128xi32, #tpu.memory_space<vmem>>, vector<1x128xi32>
    %5 = vector.broadcast %4 : vector<1x128xi32> to vector<16x128xi32>
    %6 = arith.cmpi eq, %3, %5 : vector<16x128xi32>
    %7 = arith.extui %6 : vector<16x128xi1> to vector<16x128xi32>
    %8 = arith.sitofp %7 : vector<16x128xi32> to vector<16x128xf32>
    %9 = arith.truncf %8 : vector<16x128xf32> to vector<16x128xbf16>
    %c0_1 = arith.constant 0 : index
    %c0_2 = arith.constant 0 : index
    %10 = vector.load %arg3[%c0_1, %c0_2] : memref<128x128xbf16, #tpu.memory_space<vmem>>, vector<128x128xbf16>
    %cst = arith.constant dense<0.000000e+00> : vector<16x128xf32>
    %11 = tpu.matmul %9, %10, %cst {dimension_numbers = #tpu.dot_dimension_numbers<[1], [0], [0], [1], [0, 0, 1, 1], [], []>} : vector<16x128xbf16>, vector<128x128xbf16>, vector<16x128xf32> -> vector<16x128xf32>
    %c0_i32 = arith.constant 0 : i32
    %12 = arith.cmpi eq, %arg1, %c0_i32 : i32
    %13 = arith.extui %12 : i1 to i32
    %c0_i32_3 = arith.constant 0 : i32
    %14 = arith.cmpi ne, %13, %c0_i32_3 : i32
    scf.if %14 {
      %c0_8 = arith.constant 0 : index
      %c0_9 = arith.constant 0 : index
      %21 = vector.load %arg12[%c0_8, %c0_9] : memref<16x128xf32, #tpu.memory_space<vmem>>, vector<16x128xf32>
      tpu.vector_store %arg12[%c0_8, %c0_9], %11 {strides = array<i32>} : memref<16x128xf32, #tpu.memory_space<vmem>>, vector<16x128xf32>,
    } else {
    }
    %c0_i32_4 = arith.constant 0 : i32
    %15 = arith.cmpi sgt, %arg1, %c0_i32_4 : i32
    %16 = arith.extui %15 : i1 to i32
    %c0_i32_5 = arith.constant 0 : i32
    %17 = arith.cmpi ne, %16, %c0_i32_5 : i32
    scf.if %17 {
      %c0_8 = arith.constant 0 : index
      %c0_9 = arith.constant 0 : index
      %21 = vector.load %arg12[%c0_8, %c0_9] : memref<16x128xf32, #tpu.memory_space<vmem>>, vector<16x128xf32>
      %22 = arith.addf %21, %11 : vector<16x128xf32>
      %c0_10 = arith.constant 0 : index
      %c0_11 = arith.constant 0 : index
      %23 = vector.load %arg12[%c0_10, %c0_11] : memref<16x128xf32, #tpu.memory_space<vmem>>, vector<16x128xf32>
      tpu.vector_store %arg12[%c0_10, %c0_11], %22 {strides = array<i32>} : memref<16x128xf32, #tpu.memory_space<vmem>>, vector<16x128xf32>,
    } else {
    }
    %c0_i32_6 = arith.constant 0 : i32
    %18 = arith.cmpi eq, %arg1, %c0_i32_6 : i32
    %19 = arith.extui %18 : i1 to i32
    %c0_i32_7 = arith.constant 0 : i32
    %20 = arith.cmpi ne, %19, %c0_i32_7 : i32
    scf.if %20 {
      %c0_8 = arith.constant 0 : index
      %c0_9 = arith.constant 0 : index
      %21 = vector.load %arg4[%c0_8, %c0_9] : memref<16x1xf32, #tpu.memory_space<vmem>>, vector<16x1xf32>
      %cst_10 = arith.constant 0.000000e+00 : f32
      %22 = vector.broadcast %cst_10 : f32 to vector<16x1xf32>
      %23 = arith.cmpf ogt, %21, %22 : vector<16x1xf32>
      %24 = arith.extui %23 : vector<16x1xi1> to vector<16x1xi32>
      %25 = arith.sitofp %24 : vector<16x1xi32> to vector<16x1xf32>
      %c0_11 = arith.constant 0 : index
      %c0_12 = arith.constant 0 : index
      %26 = vector.load %arg12[%c0_11, %c0_12] : memref<16x128xf32, #tpu.memory_space<vmem>>, vector<16x128xf32>
      %27 = vector.broadcast %21 : vector<16x1xf32> to vector<16x128xf32>
      %28 = arith.mulf %26, %27 : vector<16x128xf32>
      %29 = arith.truncf %28 : vector<16x128xf32> to vector<16x128xbf16>
      %c0_13 = arith.constant 0 : index
      %c0_14 = arith.constant 0 : index
      %30 = vector.load %arg6[%c0_13, %c0_14] : memref<128x128xbf16, #tpu.memory_space<vmem>>, vector<128x128xbf16>
      %cst_15 = arith.constant dense<0.000000e+00> : vector<16x128xf32>
      %31 = tpu.matmul %29, %30, %cst_15 {dimension_numbers = #tpu.dot_dimension_numbers<[1], [0], [0], [1], [0, 0, 1, 1], [], []>} : vector<16x128xbf16>, vector<128x128xbf16>, vector<16x128xf32> -> vector<16x128xf32>
      %c0_16 = arith.constant 0 : index
      %c0_17 = arith.constant 0 : index
      %32 = vector.load %arg7[%c0_16, %c0_17] : memref<1x128xf32, #tpu.memory_space<vmem>>, vector<1x128xf32>
      %33 = vector.broadcast %25 : vector<16x1xf32> to vector<16x128xf32>
      %34 = vector.broadcast %32 : vector<1x128xf32> to vector<16x128xf32>
      %35 = arith.mulf %33, %34 : vector<16x128xf32>
      %36 = arith.addf %31, %35 : vector<16x128xf32>
      %c0_18 = arith.constant 0 : index
      %c0_19 = arith.constant 0 : index
      %37 = vector.load %arg5[%c0_18, %c0_19] : memref<16x128xbf16, #tpu.memory_space<vmem>>, vector<16x128xbf16>
      %c0_20 = arith.constant 0 : index
      %c0_21 = arith.constant 0 : index
      %38 = vector.load %arg8[%c0_20, %c0_21] : memref<128x128xbf16, #tpu.memory_space<vmem>>, vector<128x128xbf16>
      %cst_22 = arith.constant dense<0.000000e+00> : vector<16x128xf32>
      %39 = tpu.matmul %37, %38, %cst_22 {dimension_numbers = #tpu.dot_dimension_numbers<[1], [0], [0], [1], [0, 0, 1, 1], [], []>} : vector<16x128xbf16>, vector<128x128xbf16>, vector<16x128xf32> -> vector<16x128xf32>
      %40 = arith.truncf %36 : vector<16x128xf32> to vector<16x128xbf16>
      %c0_23 = arith.constant 0 : index
      %c0_24 = arith.constant 0 : index
      %41 = vector.load %arg9[%c0_23, %c0_24] : memref<128x128xbf16, #tpu.memory_space<vmem>>, vector<128x128xbf16>
      %cst_25 = arith.constant dense<0.000000e+00> : vector<16x128xf32>
      %42 = tpu.matmul %40, %41, %cst_25 {dimension_numbers = #tpu.dot_dimension_numbers<[1], [0], [0], [1], [0, 0, 1, 1], [], []>} : vector<16x128xbf16>, vector<128x128xbf16>, vector<16x128xf32> -> vector<16x128xf32>
      %43 = arith.addf %39, %42 : vector<16x128xf32>
      %c0_26 = arith.constant 0 : index
      %c0_27 = arith.constant 0 : index
      %44 = vector.load %arg10[%c0_26, %c0_27] : memref<1x128xf32, #tpu.memory_space<vmem>>, vector<1x128xf32>
      %45 = vector.broadcast %44 : vector<1x128xf32> to vector<16x128xf32>
      %46 = arith.addf %43, %45 : vector<16x128xf32>
      %cst_28 = arith.constant 0.000000e+00 : f32
      %47 = vector.broadcast %cst_28 : f32 to vector<16x128xf32>
      %48 = arith.maximumf %46, %47 : vector<16x128xf32>
      %c0_29 = arith.constant 0 : index
      %c0_30 = arith.constant 0 : index
      %49 = vector.load %arg11[%c0_29, %c0_30] : memref<16x128xf32, #tpu.memory_space<vmem>>, vector<16x128xf32>
      tpu.vector_store %arg11[%c0_29, %c0_30], %48 {strides = array<i32>} : memref<16x128xf32, #tpu.memory_space<vmem>>, vector<16x128xf32>,
    } else {
    }
    return
  }
  func.func @transform_0(%arg0: i32, %arg1: i32) -> (i32, i32) {
    %c0_i32 = arith.constant 0 : i32
    %c0_i32_0 = arith.constant 0 : i32
    return %c0_i32, %arg1 : i32, i32
  }
  func.func @transform_1(%arg0: i32, %arg1: i32) -> (i32, i32) {
    %c0_i32 = arith.constant 0 : i32
    %c0_i32_0 = arith.constant 0 : i32
    return %arg1, %c0_i32 : i32, i32
  }
  func.func @transform_2(%arg0: i32, %arg1: i32) -> (i32, i32) {
    %c0_i32 = arith.constant 0 : i32
    %c0_i32_0 = arith.constant 0 : i32
    return %arg0, %c0_i32 : i32, i32
  }
  func.func @transform_3(%arg0: i32, %arg1: i32) -> (i32, i32) {
    %c0_i32 = arith.constant 0 : i32
    %c0_i32_0 = arith.constant 0 : i32
    return %arg0, %c0_i32 : i32, i32
  }
  func.func @transform_4(%arg0: i32, %arg1: i32) -> (i32, i32) {
    %c0_i32 = arith.constant 0 : i32
    %c0_i32_0 = arith.constant 0 : i32
    %c0_i32_1 = arith.constant 0 : i32
    return %c0_i32, %c0_i32_0 : i32, i32
  }
  func.func @transform_5(%arg0: i32, %arg1: i32) -> (i32, i32) {
    %c0_i32 = arith.constant 0 : i32
    %c0_i32_0 = arith.constant 0 : i32
    %c0_i32_1 = arith.constant 0 : i32
    return %c0_i32, %c0_i32_0 : i32, i32
  }
  func.func @transform_6(%arg0: i32, %arg1: i32) -> (i32, i32) {
    %c0_i32 = arith.constant 0 : i32
    %c0_i32_0 = arith.constant 0 : i32
    %c0_i32_1 = arith.constant 0 : i32
    return %c0_i32, %c0_i32_0 : i32, i32
  }
  func.func @transform_7(%arg0: i32, %arg1: i32) -> (i32, i32) {
    %c0_i32 = arith.constant 0 : i32
    %c0_i32_0 = arith.constant 0 : i32
    %c0_i32_1 = arith.constant 0 : i32
    return %c0_i32, %c0_i32_0 : i32, i32
  }
  func.func @transform_8(%arg0: i32, %arg1: i32) -> (i32, i32) {
    %c0_i32 = arith.constant 0 : i32
    %c0_i32_0 = arith.constant 0 : i32
    %c0_i32_1 = arith.constant 0 : i32
    return %c0_i32, %c0_i32_0 : i32, i32
  }
  func.func @transform_9(%arg0: i32, %arg1: i32) -> (i32, i32) {
    %c0_i32 = arith.constant 0 : i32
    %c0_i32_0 = arith.constant 0 : i32
    return %arg0, %c0_i32 : i32, i32
  }
}

</mosaic_0001>

<llo_original>
// kernel: tpu_custom_call.1
$region0: #{tpu_custom_call.1}
  #allocation0 [shape = 'u32[]', space=smem, size = 0x4, offset = 0x4, fixed_abs, tag = 'smem constant byte address 0x4 - core index']
  #allocation1 [shape = 'u32[144,128]{1,0:T(1,128)}', space=vmem, size = 0x12000, scoped, tag = 'internal scratch']
  #allocation2 [shape = 'f32[16,128]{1,0:T(8,128)}', space=vmem, size = 0x2000, scoped, tag = 'scratch operand']
  %s0 = inlined_call_operand.hbm [shape: s32[1,128], index: 0, kind: input, shape index: {}]
  %s1 = inlined_call_operand.hbm [shape: bf16[128,128], index: 1, kind: input, shape index: {}]
  %s2 = inlined_call_operand.hbm [shape: f32[16,1], index: 2, kind: input, shape index: {}]
  %s3 = inlined_call_operand.hbm [shape: bf16[16,128], index: 3, kind: input, shape index: {}]
  %s4 = inlined_call_operand.hbm [shape: bf16[128,128], index: 4, kind: input, shape index: {}]
  %s5 = inlined_call_operand.hbm [shape: f32[1,128], index: 5, kind: input, shape index: {}]
  %s6 = inlined_call_operand.hbm [shape: bf16[128,128], index: 6, kind: input, shape index: {}]
  %s7 = inlined_call_operand.hbm [shape: bf16[128,128], index: 7, kind: input, shape index: {}]
  %s8 = inlined_call_operand.hbm [shape: f32[1,128], index: 8, kind: input, shape index: {}]
  %s9 = inlined_call_operand.hbm [shape: f32[16,128], index: 9, kind: output, shape index: {}]
  %s10 = sld [smem:[#allocation0]]
  $region94: #{tpu_custom_call.1} parent=0
    _
  %s12 = ssub.s32 1, %s10
  %s13 = scalar_select 0, %s12, %s10
  $region1: #{tpu_custom_call.1} parent=0
    #allocation3 [shape = 'u8[512]{0}', space=vmem, size = 0x400, scoped, tag = 'input window, operand 0, single buffered']
    #allocation4 [shape = 's32[1]{0}', space=sflag, size = 0x4, scoped, tag = 'scoped memory for tpu_custom_call.1']
    #allocation5 [shape = 's32[1]{0}', space=sflag, size = 0x4, scoped, tag = 'scoped memory for tpu_custom_call.1']
    #allocation6 [shape = 'u8[32768]{0}', space=vmem, size = 0x8000, scoped, tag = 'input window, operand 1, single buffered']
    #allocation7 [shape = 's32[1]{0}', space=sflag, size = 0x4, scoped, tag = 'scoped memory for tpu_custom_call.1']
    #allocation8 [shape = 'u8[8192]{0}', space=vmem, size = 0x2000, scoped, tag = 'input window, operand 2, single buffered']
    #allocation9 [shape = 'u8[4096]{0}', space=vmem, size = 0x1000, scoped, tag = 'input window, operand 3, single buffered']
    #allocation10 [shape = 's32[1]{0}', space=sflag, size = 0x4, scoped, tag = 'scoped memory for tpu_custom_call.1']
    #allocation11 [shape = 'u8[32768]{0}', space=vmem, size = 0x8000, scoped, tag = 'input window, operand 4, single buffered']
    #allocation12 [shape = 'u8[512]{0}', space=vmem, size = 0x400, scoped, tag = 'input window, operand 5, single buffered']
    #allocation13 [shape = 's32[1]{0}', space=sflag, size = 0x4, scoped, tag = 'scoped memory for tpu_custom_call.1']
    #allocation14 [shape = 'u8[32768]{0}', space=vmem, size = 0x8000, scoped, tag = 'input window, operand 6, single buffered']
    #allocation15 [shape = 'u8[32768]{0}', space=vmem, size = 0x8000, scoped, tag = 'input window, operand 7, single buffered']
    #allocation16 [shape = 's32[1]{0}', space=sflag, size = 0x4, scoped, tag = 'scoped memory for tpu_custom_call.1']
    #allocation17 [shape = 'u8[512]{0}', space=vmem, size = 0x400, scoped, tag = 'input window, operand 8, single buffered']
    #allocation18 [shape = 'u8[8192]{0}', space=vmem, size = 0x2000, scoped, tag = 'output window, operand 0, single buffered']
    %14 = vsyncpa [#allocation4], 0
    %15 = vsyncpa [#allocation7], 0
    %16 = vsyncpa [#allocation10], 0
    %17 = vsyncpa [#allocation13], 0
    %18 = vsyncpa [#allocation16], 0
    %19 = vsyncpa [#allocation5], 0
    // Predicated region
    $region2: #{tpu_custom_call.1} parent=1 // pred_check
      _
    $region3: #{tpu_custom_call.1} parent=1 // pred_check_branch
      %21 = sbr.rel (0) target = $region5
    $region4: #{tpu_custom_call.1} parent=1 // pred_region
      %s23 = ssub.s32 16, 16
      %24 = vsyncadd [#allocation4], %s23
      %s26 = sshll.u32 [#allocation3], 4
      %s27 = int_to_ptr.vmem [resolvable:$true] %s26
      %29 = dma.hbm_to_vmem [thread:$0]  %s0, 16, %s27, [#allocation4]
    $region5: #{tpu_custom_call.1} parent=1 // pred_fallthru
      _
    // Predicated region
    $region6: #{tpu_custom_call.1} parent=1 // pred_check
      _
    $region7: #{tpu_custom_call.1} parent=1 // pred_check_branch
      %31 = sbr.rel (0) target = $region9
    $region8: #{tpu_custom_call.1} parent=1 // pred_region
      %s33 = ssub.s32 1024, 1024
      %34 = vsyncadd [#allocation7], %s33
      %s35 = sshll.u32 [#allocation6], 4
      %s36 = int_to_ptr.vmem [resolvable:$true] %s35
      %41 = dma.hbm_to_vmem [thread:$0]  %s1, 1024, %s36, [#allocation7], 64, 64, 4
    $region9: #{tpu_custom_call.1} parent=1 // pred_fallthru
      _
    // Predicated region
    $region10: #{tpu_custom_call.1} parent=1 // pred_check
      _
    $region11: #{tpu_custom_call.1} parent=1 // pred_check_branch
      %43 = sbr.rel (0) target = $region13
    $region12: #{tpu_custom_call.1} parent=1 // pred_region
      %s45 = ssub.s32 256, 256
      %46 = vsyncadd [#allocation7], %s45
      %s47 = sshll.u32 [#allocation8], 4
      %s48 = int_to_ptr.vmem [resolvable:$true] %s47
      %53 = dma.hbm_to_vmem [thread:$0]  %s2, 256, %s48, [#allocation7], 128, 128, 8
    $region13: #{tpu_custom_call.1} parent=1 // pred_fallthru
      _
    // Predicated region
    $region14: #{tpu_custom_call.1} parent=1 // pred_check
      _
    $region15: #{tpu_custom_call.1} parent=1 // pred_check_branch
      %55 = sbr.rel (0) target = $region17
    $region16: #{tpu_custom_call.1} parent=1 // pred_region
      %s57 = ssub.s32 128, 128
      %58 = vsyncadd [#allocation10], %s57
      %s59 = sshll.u32 [#allocation9], 4
      %s60 = int_to_ptr.vmem [resolvable:$true] %s59
      %65 = dma.hbm_to_vmem [thread:$0]  %s3, 128, %s60, [#allocation10], 64, 64, 4
    $region17: #{tpu_custom_call.1} parent=1 // pred_fallthru
      _
    // Predicated region
    $region18: #{tpu_custom_call.1} parent=1 // pred_check
      _
    $region19: #{tpu_custom_call.1} parent=1 // pred_check_branch
      %67 = sbr.rel (0) target = $region21
    $region20: #{tpu_custom_call.1} parent=1 // pred_region
      %s69 = ssub.s32 1024, 1024
      %70 = vsyncadd [#allocation10], %s69
      %s71 = sshll.u32 [#allocation11], 4
      %s72 = int_to_ptr.vmem [resolvable:$true] %s71
      %77 = dma.hbm_to_vmem [thread:$0]  %s4, 1024, %s72, [#allocation10], 64, 64, 4
    $region21: #{tpu_custom_call.1} parent=1 // pred_fallthru
      _
    // Predicated region
    $region22: #{tpu_custom_call.1} parent=1 // pred_check
      _
    $region23: #{tpu_custom_call.1} parent=1 // pred_check_branch
      %79 = sbr.rel (0) target = $region25
    $region24: #{tpu_custom_call.1} parent=1 // pred_region
      %s81 = ssub.s32 16, 16
      %82 = vsyncadd [#allocation13], %s81
      %s84 = sshll.u32 [#allocation12], 4
      %s85 = int_to_ptr.vmem [resolvable:$true] %s84
      %87 = dma.hbm_to_vmem [thread:$0]  %s5, 16, %s85, [#allocation13]
    $region25: #{tpu_custom_call.1} parent=1 // pred_fallthru
      _
    // Predicated region
    $region26: #{tpu_custom_call.1} parent=1 // pred_check
      _
    $region27: #{tpu_custom_call.1} parent=1 // pred_check_branch
      %89 = sbr.rel (0) target = $region29
    $region28: #{tpu_custom_call.1} parent=1 // pred_region
      %s91 = ssub.s32 1024, 1024
      %92 = vsyncadd [#allocation13], %s91
      %s93 = sshll.u32 [#allocation14], 4
      %s94 = int_to_ptr.vmem [resolvable:$true] %s93
      %99 = dma.hbm_to_vmem [thread:$0]  %s6, 1024, %s94, [#allocation13], 64, 64, 4
    $region29: #{tpu_custom_call.1} parent=1 // pred_fallthru
      _
    // Predicated region
    $region30: #{tpu_custom_call.1} parent=1 // pred_check
      _
    $region31: #{tpu_custom_call.1} parent=1 // pred_check_branch
      %101 = sbr.rel (0) target = $region33
    $region32: #{tpu_custom_call.1} parent=1 // pred_region
      %s103 = ssub.s32 1024, 1024
      %104 = vsyncadd [#allocation16], %s103
      %s105 = sshll.u32 [#allocation15], 4
      %s106 = int_to_ptr.vmem [resolvable:$true] %s105
      %111 = dma.hbm_to_vmem [thread:$0]  %s7, 1024, %s106, [#allocation16], 64, 64, 4
    $region33: #{tpu_custom_call.1} parent=1 // pred_fallthru
      _
    // Predicated region
    $region34: #{tpu_custom_call.1} parent=1 // pred_check
      _
    $region35: #{tpu_custom_call.1} parent=1 // pred_check_branch
      %113 = sbr.rel (0) target = $region37
    $region36: #{tpu_custom_call.1} parent=1 // pred_region
      %s115 = ssub.s32 16, 16
      %116 = vsyncadd [#allocation16], %s115
      %s118 = sshll.u32 [#allocation17], 4
      %s119 = int_to_ptr.vmem [resolvable:$true] %s118
      %121 = dma.hbm_to_vmem [thread:$0]  %s8, 16, %s119, [#allocation16]
    $region37: #{tpu_custom_call.1} parent=1 // pred_fallthru
      _
    // Predicated region
    $region38: #{tpu_custom_call.1} parent=1 // pred_check
      _
    $region39: #{tpu_custom_call.1} parent=1 // pred_check_branch
      %123 = sbr.rel (0) target = $region41
    $region40: #{tpu_custom_call.1} parent=1 // pred_region
      %124 = dma.done [#allocation4], 16
    $region41: #{tpu_custom_call.1} parent=1 // pred_fallthru
      _
    // Predicated region
    $region42: #{tpu_custom_call.1} parent=1 // pred_check
      _
    $region43: #{tpu_custom_call.1} parent=1 // pred_check_branch
      %126 = sbr.rel (0) target = $region45
    $region44: #{tpu_custom_call.1} parent=1 // pred_region
      %127 = dma.done [#allocation7], 1024
    $region45: #{tpu_custom_call.1} parent=1 // pred_fallthru
      _
    // Predicated region
    $region46: #{tpu_custom_call.1} parent=1 // pred_check
      _
    $region47: #{tpu_custom_call.1} parent=1 // pred_check_branch
      %129 = sbr.rel (0) target = $region49
    $region48: #{tpu_custom_call.1} parent=1 // pred_region
      %130 = dma.done [#allocation7], 256
    $region49: #{tpu_custom_call.1} parent=1 // pred_fallthru
      _
    // Predicated region
    $region50: #{tpu_custom_call.1} parent=1 // pred_check
      _
    $region51: #{tpu_custom_call.1} parent=1 // pred_check_branch
      %132 = sbr.rel (0) target = $region53
    $region52: #{tpu_custom_call.1} parent=1 // pred_region
      %133 = dma.done [#allocation10], 128
    $region53: #{tpu_custom_call.1} parent=1 // pred_fallthru
      _
    // Predicated region
    $region54: #{tpu_custom_call.1} parent=1 // pred_check
      _
    $region55: #{tpu_custom_call.1} parent=1 // pred_check_branch
      %135 = sbr.rel (0) target = $region57
    $region56: #{tpu_custom_call.1} parent=1 // pred_region
      %136 = dma.done [#allocation10], 1024
    $region57: #{tpu_custom_call.1} parent=1 // pred_fallthru
      _
    // Predicated region
    $region58: #{tpu_custom_call.1} parent=1 // pred_check
      _
    $region59: #{tpu_custom_call.1} parent=1 // pred_check_branch
      %138 = sbr.rel (0) target = $region61
    $region60: #{tpu_custom_call.1} parent=1 // pred_region
      %139 = dma.done [#allocation13], 16
    $region61: #{tpu_custom_call.1} parent=1 // pred_fallthru
      _
    // Predicated region
    $region62: #{tpu_custom_call.1} parent=1 // pred_check
      _
    $region63: #{tpu_custom_call.1} parent=1 // pred_check_branch
      %141 = sbr.rel (0) target = $region65
    $region64: #{tpu_custom_call.1} parent=1 // pred_region
      %142 = dma.done [#allocation13], 1024
    $region65: #{tpu_custom_call.1} parent=1 // pred_fallthru
      _
    // Predicated region
    $region66: #{tpu_custom_call.1} parent=1 // pred_check
      _
    $region67: #{tpu_custom_call.1} parent=1 // pred_check_branch
      %144 = sbr.rel (0) target = $region69
    $region68: #{tpu_custom_call.1} parent=1 // pred_region
      %145 = dma.done [#allocation16], 1024
    $region69: #{tpu_custom_call.1} parent=1 // pred_fallthru
      _
    // Predicated region
    $region70: #{tpu_custom_call.1} parent=1 // pred_check
      _
    $region71: #{tpu_custom_call.1} parent=1 // pred_check_branch
      %147 = sbr.rel (0) target = $region73
    $region72: #{tpu_custom_call.1} parent=1 // pred_region
      %148 = dma.done [#allocation16], 16
    $region73: #{tpu_custom_call.1} parent=1 // pred_fallthru
      _
    %v150 = vlaneseq
    %v151 = vshrl.u32 %v150, 7
    %v152 = vadd.s32 %v151, 8
    %s153 = smul.u32 0, 16
    %v154 = vstv %s153
    %v155 = vadd.s32 %v151, %v154
    %v156 = vadd.s32 %v152, %v154
    %v157 = vld [vmem:[#allocation3] sm:$0x1]
    %v158 = vlaneseq
    %v159 = vshrl.u32 %v158, 7
    %v160 = vsub.s32 0, %v159
    %v161 = vrot.slane %v157, %v160
    %vm162 = vcmp.eq.s32.totalorder %v155, %v161
    %vm163 = vcmp.eq.s32.totalorder %v156, %v161
    %v164 = vsel %vm162, 1, 0
    %v165 = vsel %vm163, 1, 0
    %v166 = vcvt.s32.f32 %v164
    %v167 = vcvt.s32.f32 %v165
    %v168 = vpack.c.bf16 %v167, %v166
    %v169 = vld [vmem:[#allocation6] sm:$0xf]
    %v170 = vld [vmem:[#allocation6 + $0x4] sm:$0xf]
    %v171 = vld [vmem:[#allocation6 + $0x8] sm:$0xf]
    %v172 = vld [vmem:[#allocation6 + $0xc] sm:$0xf]
    %v173 = vld [vmem:[#allocation6 + $0x10] sm:$0xf]
    %v174 = vld [vmem:[#allocation6 + $0x14] sm:$0xf]
    %v175 = vld [vmem:[#allocation6 + $0x18] sm:$0xf]
    %v176 = vld [vmem:[#allocation6 + $0x1c] sm:$0xf]
    %v177 = vld [vmem:[#allocation6 + $0x20] sm:$0xf]
    %v178 = vld [vmem:[#allocation6 + $0x24] sm:$0xf]
    %v179 = vld [vmem:[#allocation6 + $0x28] sm:$0xf]
    %v180 = vld [vmem:[#allocation6 + $0x2c] sm:$0xf]
    %v181 = vld [vmem:[#allocation6 + $0x30] sm:$0xf]
    %v182 = vld [vmem:[#allocation6 + $0x34] sm:$0xf]
    %v183 = vld [vmem:[#allocation6 + $0x38] sm:$0xf]
    %v184 = vld [vmem:[#allocation6 + $0x3c] sm:$0xf]
    %v201 = vunpack.c.l.b16 %v169
    %v202 = vunpack.c.l.b16 %v170
    %v203 = vunpack.c.l.b16 %v171
    %v204 = vunpack.c.l.b16 %v172
    %v205 = vunpack.c.l.b16 %v173
    %v206 = vunpack.c.l.b16 %v174
    %v207 = vunpack.c.l.b16 %v175
    %v208 = vunpack.c.l.b16 %v176
    %v209 = vunpack.c.l.b16 %v177
    %v210 = vunpack.c.l.b16 %v178
    %v211 = vunpack.c.l.b16 %v179
    %v212 = vunpack.c.l.b16 %v180
    %v213 = vunpack.c.l.b16 %v181
    %v214 = vunpack.c.l.b16 %v182
    %v215 = vunpack.c.l.b16 %v183
    %v216 = vunpack.c.l.b16 %v184
    %v217 = vpack.c.b16 %v202, %v201
    %v218 = vpack.c.b16 %v204, %v203
    %v219 = vpack.c.b16 %v206, %v205
    %v220 = vpack.c.b16 %v208, %v207
    %v221 = vpack.c.b16 %v210, %v209
    %v222 = vpack.c.b16 %v212, %v211
    %v223 = vpack.c.b16 %v214, %v213
    %v224 = vpack.c.b16 %v216, %v215
    %233 = vmatprep.subr.bf16.mxu0 0
    %234 = vmatpush1.bf16.msra.mxu0 %v217
    %235 = vmatprep.subr.bf16.mxu0 0
    %236 = vmatpush1.bf16.msra.mxu0 %v218
    %237 = vmatprep.subr.bf16.mxu0 0
    %238 = vmatpush1.bf16.msra.mxu0 %v219
    %239 = vmatprep.subr.bf16.mxu0 0
    %240 = vmatpush1.bf16.msra.mxu0 %v220
    %241 = vmatprep.subr.bf16.mxu0 0
    %242 = vmatpush1.bf16.msra.mxu0 %v221
    %243 = vmatprep.subr.bf16.mxu0 0
    %244 = vmatpush1.bf16.msra.mxu0 %v222
    %245 = vmatprep.subr.bf16.mxu0 0
    %246 = vmatpush1.bf16.msra.mxu0 %v223
    %247 = vmatprep.subr.bf16.mxu0 0
    %248 = vmatpush1.bf16.msra.mxu0 %v224
    %249 = vmatprep.subr.bf16.mxu0 0
    %250 = vmatpush1.bf16.msra.mxu0 0
    %251 = vmatprep.subr.bf16.mxu0 0
    %252 = vmatpush1.bf16.msra.mxu0 0
    %253 = vmatprep.subr.bf16.mxu0 0
    %254 = vmatpush1.bf16.msra.mxu0 0
    %255 = vmatprep.subr.bf16.mxu0 0
    %256 = vmatpush1.bf16.msra.mxu0 0
    %257 = vmatprep.subr.bf16.mxu0 0
    %258 = vmatpush1.bf16.msra.mxu0 0
    %259 = vmatprep.subr.bf16.mxu0 0
    %260 = vmatpush1.bf16.msra.mxu0 0
    %261 = vmatprep.subr.bf16.mxu0 0
    %262 = vmatpush1.bf16.msra.mxu0 0
    %263 = vmatprep.subr.bf16.mxu0 0
    %264 = vmatpush1.bf16.msra.mxu0 0
    %265 = vmatprep.mubr.bf16.mxu0 0
    %266 = vmatmul.mubr.bf16.gmra.mrb[0].mxu0 %v168
    %v267 = vpop.f32.mrb[0].mxu0
    %v268 = vadd.f32 0.0, %v267
    %v269 = vpop.f32.mrb[0].mxu0
    %v270 = vpop.f32.mrb[0].mxu0
    %v271 = vadd.f32 0.0, %v270
    %v272 = vpop.f32.mrb[0].mxu0
    %273 = vdwg.mxu0
    %p274 = scmp.eq.s32.totalorder 0, 0
    // Predicated region
    $region74: #{tpu_custom_call.1} parent=1 // pred_check
      %p275 = pneg %p274
    $region75: #{tpu_custom_call.1} parent=1 // pred_check_branch
      %277 = sbr.rel (%p275) target = $region77
    $region76: #{tpu_custom_call.1} parent=1 // pred_region
      %278 = vst [vmem:[#allocation2] sm:$0xff] %v268
      %279 = vst [vmem:[#allocation2 + $0x8] sm:$0xff] %v271
    $region77: #{tpu_custom_call.1} parent=1 // pred_fallthru
      _
    %p280 = scmp.gt.s32.totalorder 0, 0
    // Predicated region
    $region78: #{tpu_custom_call.1} parent=1 // pred_check
      %p281 = pneg %p280
    $region79: #{tpu_custom_call.1} parent=1 // pred_check_branch
      %283 = sbr.rel (%p281) target = $region81
    $region80: #{tpu_custom_call.1} parent=1 // pred_region
      %v284 = vld [vmem:[#allocation2] sm:$0xff]
      %v285 = vld [vmem:[#allocation2 + $0x8] sm:$0xff]
      %v286 = vadd.f32 %v284, %v268
      %v287 = vadd.f32 %v285, %v271
      %288 = vst [vmem:[#allocation2] sm:$0xff] %v286
      %289 = vst [vmem:[#allocation2 + $0x8] sm:$0xff] %v287
    $region81: #{tpu_custom_call.1} parent=1 // pred_fallthru
      _
    // Predicated region
    $region82: #{tpu_custom_call.1} parent=1 // pred_check
      %p290 = pneg %p274
    $region83: #{tpu_custom_call.1} parent=1 // pred_check_branch
      %292 = sbr.rel (%p290) target = $region85
    $region84: #{tpu_custom_call.1} parent=1 // pred_region
      %v293 = vld [vmem:[#allocation8] sm:$0xff]
      %v294 = vld [vmem:[#allocation8 + $0x8] sm:$0xff]
      %vm295 = vcmp.gt.f32.partialorder %v293, 0.0
      %vm296 = vcmp.gt.f32.partialorder %v294, 0.0
      %v297 = vsel %vm295, 1, 0
      %v298 = vsel %vm296, 1, 0
      %v299 = vcvt.s32.f32 %v297
      %v300 = vcvt.s32.f32 %v298
      %v301 = vld [vmem:[#allocation2] sm:$0xff]
      %v302 = vld [vmem:[#allocation2 + $0x8] sm:$0xff]
      %304 = vset.pattern.permute.xlu0 0
      %305 = vperm.xlu0 %304, %v293
      %v306 = vpop.permute.xlu0 %305
      %309 = vset.pattern.permute.xlu0 0
      %310 = vperm.xlu0 %309, %v294
      %v311 = vpop.permute.xlu0 %310
      %v313 = vmul.f32 %v301, %v306
      %v314 = vmul.f32 %v302, %v311
      %v315 = vpack.c.bf16 %v314, %v313
      %v316 = vld [vmem:[#allocation11] sm:$0xf]
      %v317 = vld [vmem:[#allocation11 + $0x4] sm:$0xf]
      %v318 = vld [vmem:[#allocation11 + $0x8] sm:$0xf]
      %v319 = vld [vmem:[#allocation11 + $0xc] sm:$0xf]
      %v320 = vld [vmem:[#allocation11 + $0x10] sm:$0xf]
      %v321 = vld [vmem:[#allocation11 + $0x14] sm:$0xf]
      %v322 = vld [vmem:[#allocation11 + $0x18] sm:$0xf]
      %v323 = vld [vmem:[#allocation11 + $0x1c] sm:$0xf]
      %v324 = vld [vmem:[#allocation11 + $0x20] sm:$0xf]
      %v325 = vld [vmem:[#allocation11 + $0x24] sm:$0xf]
      %v326 = vld [vmem:[#allocation11 + $0x28] sm:$0xf]
      %v327 = vld [vmem:[#allocation11 + $0x2c] sm:$0xf]
      %v328 = vld [vmem:[#allocation11 + $0x30] sm:$0xf]
      %v329 = vld [vmem:[#allocation11 + $0x34] sm:$0xf]
      %v330 = vld [vmem:[#allocation11 + $0x38] sm:$0xf]
      %v331 = vld [vmem:[#allocation11 + $0x3c] sm:$0xf]
      %v332 = vld [vmem:[#allocation12] sm:$0x1]
      %334 = vset.pattern.permute.xlu0 0
      %335 = vperm.xlu0 %334, %v299
      %v336 = vpop.permute.xlu0 %335
      %339 = vset.pattern.permute.xlu0 0
      %340 = vperm.xlu0 %339, %v300
      %v341 = vpop.permute.xlu0 %340
      %v344 = vlaneseq
      %v345 = vshrl.u32 %v344, 7
      %v346 = vsub.s32 0, %v345
      %v347 = vrot.slane %v332, %v346
      %v349 = vmul.f32 %v336, %v347
      %v350 = vmul.f32 %v341, %v347
      %v367 = vunpack.c.l.b16 %v316
      %v368 = vunpack.c.l.b16 %v317
      %v369 = vunpack.c.l.b16 %v318
      %v370 = vunpack.c.l.b16 %v319
      %v371 = vunpack.c.l.b16 %v320
      %v372 = vunpack.c.l.b16 %v321
      %v373 = vunpack.c.l.b16 %v322
      %v374 = vunpack.c.l.b16 %v323
      %v375 = vunpack.c.l.b16 %v324
      %v376 = vunpack.c.l.b16 %v325
      %v377 = vunpack.c.l.b16 %v326
      %v378 = vunpack.c.l.b16 %v327
      %v379 = vunpack.c.l.b16 %v328
      %v380 = vunpack.c.l.b16 %v329
      %v381 = vunpack.c.l.b16 %v330
      %v382 = vunpack.c.l.b16 %v331
      %v383 = vpack.c.b16 %v368, %v367
      %v384 = vpack.c.b16 %v370, %v369
      %v385 = vpack.c.b16 %v372, %v371
      %v386 = vpack.c.b16 %v374, %v373
      %v387 = vpack.c.b16 %v376, %v375
      %v388 = vpack.c.b16 %v378, %v377
      %v389 = vpack.c.b16 %v380, %v379
      %v390 = vpack.c.b16 %v382, %v381
      %399 = vmatprep.subr.bf16.mxu0 0
      %400 = vmatpush1.bf16.msra.mxu0 %v383
      %401 = vmatprep.subr.bf16.mxu0 0
      %402 = vmatpush1.bf16.msra.mxu0 %v384
      %403 = vmatprep.subr.bf16.mxu0 0
      %404 = vmatpush1.bf16.msra.mxu0 %v385
      %405 = vmatprep.subr.bf16.mxu0 0
      %406 = vmatpush1.bf16.msra.mxu0 %v386
      %407 = vmatprep.subr.bf16.mxu0 0
      %408 = vmatpush1.bf16.msra.mxu0 %v387
      %409 = vmatprep.subr.bf16.mxu0 0
      %410 = vmatpush1.bf16.msra.mxu0 %v388
      %411 = vmatprep.subr.bf16.mxu0 0
      %412 = vmatpush1.bf16.msra.mxu0 %v389
      %413 = vmatprep.subr.bf16.mxu0 0
      %414 = vmatpush1.bf16.msra.mxu0 %v390
      %415 = vmatprep.subr.bf16.mxu0 0
      %416 = vmatpush1.bf16.msra.mxu0 0
      %417 = vmatprep.subr.bf16.mxu0 0
      %418 = vmatpush1.bf16.msra.mxu0 0
      %419 = vmatprep.subr.bf16.mxu0 0
      %420 = vmatpush1.bf16.msra.mxu0 0
      %421 = vmatprep.subr.bf16.mxu0 0
      %422 = vmatpush1.bf16.msra.mxu0 0
      %423 = vmatprep.subr.bf16.mxu0 0
      %424 = vmatpush1.bf16.msra.mxu0 0
      %425 = vmatprep.subr.bf16.mxu0 0
      %426 = vmatpush1.bf16.msra.mxu0 0
      %427 = vmatprep.subr.bf16.mxu0 0
      %428 = vmatpush1.bf16.msra.mxu0 0
      %429 = vmatprep.subr.bf16.mxu0 0
      %430 = vmatpush1.bf16.msra.mxu0 0
      %431 = vmatprep.mubr.bf16.mxu0 0
      %432 = vmatmul.mubr.bf16.gmra.mrb[0].mxu0 %v315
      %v433 = vpop.f32.mrb[0].mxu0
      %v434 = vadd.f32 %v349, %v433
      %v435 = vpop.f32.mrb[0].mxu0
      %v436 = vpop.f32.mrb[0].mxu0
      %v437 = vadd.f32 %v350, %v436
      %v438 = vpop.f32.mrb[0].mxu0
      %439 = vdwg.mxu0
      %v440 = vld [vmem:[#allocation9] sm:$0xf]
      %v441 = vld [vmem:[#allocation9 + $0x4] sm:$0xf]
      %v442 = vld [vmem:[#allocation14] sm:$0xf]
      %v443 = vld [vmem:[#allocation14 + $0x4] sm:$0xf]
      %v444 = vld [vmem:[#allocation14 + $0x8] sm:$0xf]
      %v445 = vld [vmem:[#allocation14 + $0xc] sm:$0xf]
      %v446 = vld [vmem:[#allocation14 + $0x10] sm:$0xf]
      %v447 = vld [vmem:[#allocation14 + $0x14] sm:$0xf]
      %v448 = vld [vmem:[#allocation14 + $0x18] sm:$0xf]
      %v449 = vld [vmem:[#allocation14 + $0x1c] sm:$0xf]
      %v450 = vld [vmem:[#allocation14 + $0x20] sm:$0xf]
      %v451 = vld [vmem:[#allocation14 + $0x24] sm:$0xf]
      %v452 = vld [vmem:[#allocation14 + $0x28] sm:$0xf]
      %v453 = vld [vmem:[#allocation14 + $0x2c] sm:$0xf]
      %v454 = vld [vmem:[#allocation14 + $0x30] sm:$0xf]
      %v455 = vld [vmem:[#allocation14 + $0x34] sm:$0xf]
      %v456 = vld [vmem:[#allocation14 + $0x38] sm:$0xf]
      %v457 = vld [vmem:[#allocation14 + $0x3c] sm:$0xf]
      %v458 = vpack.c.bf16 %v437, %v434
      %v459 = vld [vmem:[#allocation15] sm:$0xf]
      %v460 = vld [vmem:[#allocation15 + $0x4] sm:$0xf]
      %v461 = vld [vmem:[#allocation15 + $0x8] sm:$0xf]
      %v462 = vld [vmem:[#allocation15 + $0xc] sm:$0xf]
      %v463 = vld [vmem:[#allocation15 + $0x10] sm:$0xf]
      %v464 = vld [vmem:[#allocation15 + $0x14] sm:$0xf]
      %v465 = vld [vmem:[#allocation15 + $0x18] sm:$0xf]
      %v466 = vld [vmem:[#allocation15 + $0x1c] sm:$0xf]
      %v467 = vld [vmem:[#allocation15 + $0x20] sm:$0xf]
      %v468 = vld [vmem:[#allocation15 + $0x24] sm:$0xf]
      %v469 = vld [vmem:[#allocation15 + $0x28] sm:$0xf]
      %v470 = vld [vmem:[#allocation15 + $0x2c] sm:$0xf]
      %v471 = vld [vmem:[#allocation15 + $0x30] sm:$0xf]
      %v472 = vld [vmem:[#allocation15 + $0x34] sm:$0xf]
      %v473 = vld [vmem:[#allocation15 + $0x38] sm:$0xf]
      %v474 = vld [vmem:[#allocation15 + $0x3c] sm:$0xf]
      %v491 = vunpack.c.l.b16 %v459
      %v492 = vunpack.c.l.b16 %v460
      %v493 = vunpack.c.l.b16 %v461
      %v494 = vunpack.c.l.b16 %v462
      %v495 = vunpack.c.l.b16 %v463
      %v496 = vunpack.c.l.b16 %v464
      %v497 = vunpack.c.l.b16 %v465
      %v498 = vunpack.c.l.b16 %v466
      %v499 = vunpack.c.l.b16 %v467
      %v500 = vunpack.c.l.b16 %v468
      %v501 = vunpack.c.l.b16 %v469
      %v502 = vunpack.c.l.b16 %v470
      %v503 = vunpack.c.l.b16 %v471
      %v504 = vunpack.c.l.b16 %v472
      %v505 = vunpack.c.l.b16 %v473
      %v506 = vunpack.c.l.b16 %v474
      %v507 = vpack.c.b16 %v492, %v491
      %v508 = vpack.c.b16 %v494, %v493
      %v509 = vpack.c.b16 %v496, %v495
      %v510 = vpack.c.b16 %v498, %v497
      %v511 = vpack.c.b16 %v500, %v499
      %v512 = vpack.c.b16 %v502, %v501
      %v513 = vpack.c.b16 %v504, %v503
      %v514 = vpack.c.b16 %v506, %v505
      %523 = vmatprep.subr.bf16.mxu0 0
      %524 = vmatpush1.bf16.msra.mxu0 %v507
      %525 = vmatprep.subr.bf16.mxu0 0
      %526 = vmatpush1.bf16.msra.mxu0 %v508
      %527 = vmatprep.subr.bf16.mxu0 0
      %528 = vmatpush1.bf16.msra.mxu0 %v509
      %529 = vmatprep.subr.bf16.mxu0 0
      %530 = vmatpush1.bf16.msra.mxu0 %v510
      %531 = vmatprep.subr.bf16.mxu0 0
      %532 = vmatpush1.bf16.msra.mxu0 %v511
      %533 = vmatprep.subr.bf16.mxu0 0
      %534 = vmatpush1.bf16.msra.mxu0 %v512
      %535 = vmatprep.subr.bf16.mxu0 0
      %536 = vmatpush1.bf16.msra.mxu0 %v513
      %537 = vmatprep.subr.bf16.mxu0 0
      %538 = vmatpush1.bf16.msra.mxu0 %v514
      %539 = vmatprep.subr.bf16.mxu0 0
      %540 = vmatpush1.bf16.msra.mxu0 0
      %541 = vmatprep.subr.bf16.mxu0 0
      %542 = vmatpush1.bf16.msra.mxu0 0
      %543 = vmatprep.subr.bf16.mxu0 0
      %544 = vmatpush1.bf16.msra.mxu0 0
      %545 = vmatprep.subr.bf16.mxu0 0
      %546 = vmatpush1.bf16.msra.mxu0 0
      %547 = vmatprep.subr.bf16.mxu0 0
      %548 = vmatpush1.bf16.msra.mxu0 0
      %549 = vmatprep.subr.bf16.mxu0 0
      %550 = vmatpush1.bf16.msra.mxu0 0
      %551 = vmatprep.subr.bf16.mxu0 0
      %552 = vmatpush1.bf16.msra.mxu0 0
      %553 = vmatprep.subr.bf16.mxu0 0
      %554 = vmatpush1.bf16.msra.mxu0 0
      %555 = vmatprep.mubr.bf16.mxu0 0
      %556 = vmatmul.mubr.bf16.gmra.mrb[0].mxu0 %v458
      %v557 = vpop.f32.mrb[0].mxu0
      %v558 = vadd.f32 0.0, %v557
      %v559 = vpop.f32.mrb[0].mxu0
      %v560 = vpop.f32.mrb[0].mxu0
      %v561 = vadd.f32 0.0, %v560
      %v562 = vpop.f32.mrb[0].mxu0
      %563 = vdwg.mxu0
      %v566 = vunpack.c.l.b16 %v440
      %v567 = vunpack.c.l.b16 %v441
      %v568 = vpack.c.b16 %v567, %v566
      %v586 = vunpack.c.l.b16 %v442
      %v587 = vunpack.c.l.b16 %v443
      %v588 = vunpack.c.l.b16 %v444
      %v589 = vunpack.c.l.b16 %v445
      %v590 = vunpack.c.l.b16 %v446
      %v591 = vunpack.c.l.b16 %v447
      %v592 = vunpack.c.l.b16 %v448
      %v593 = vunpack.c.l.b16 %v449
      %v594 = vunpack.c.l.b16 %v450
      %v595 = vunpack.c.l.b16 %v451
      %v596 = vunpack.c.l.b16 %v452
      %v597 = vunpack.c.l.b16 %v453
      %v598 = vunpack.c.l.b16 %v454
      %v599 = vunpack.c.l.b16 %v455
      %v600 = vunpack.c.l.b16 %v456
      %v601 = vunpack.c.l.b16 %v457
      %v602 = vpack.c.b16 %v587, %v586
      %v603 = vpack.c.b16 %v589, %v588
      %v604 = vpack.c.b16 %v591, %v590
      %v605 = vpack.c.b16 %v593, %v592
      %v606 = vpack.c.b16 %v595, %v594
      %v607 = vpack.c.b16 %v597, %v596
      %v608 = vpack.c.b16 %v599, %v598
      %v609 = vpack.c.b16 %v601, %v600
      %618 = vmatprep.subr.bf16.mxu0 0
      %619 = vmatpush1.bf16.msra.mxu0 %v602
      %620 = vmatprep.subr.bf16.mxu0 0
      %621 = vmatpush1.bf16.msra.mxu0 %v603
      %622 = vmatprep.subr.bf16.mxu0 0
      %623 = vmatpush1.bf16.msra.mxu0 %v604
      %624 = vmatprep.subr.bf16.mxu0 0
      %625 = vmatpush1.bf16.msra.mxu0 %v605
      %626 = vmatprep.subr.bf16.mxu0 0
      %627 = vmatpush1.bf16.msra.mxu0 %v606
      %628 = vmatprep.subr.bf16.mxu0 0
      %629 = vmatpush1.bf16.msra.mxu0 %v607
      %630 = vmatprep.subr.bf16.mxu0 0
      %631 = vmatpush1.bf16.msra.mxu0 %v608
      %632 = vmatprep.subr.bf16.mxu0 0
      %633 = vmatpush1.bf16.msra.mxu0 %v609
      %634 = vmatprep.subr.bf16.mxu0 0
      %635 = vmatpush1.bf16.msra.mxu0 0
      %636 = vmatprep.subr.bf16.mxu0 0
      %637 = vmatpush1.bf16.msra.mxu0 0
      %638 = vmatprep.subr.bf16.mxu0 0
      %639 = vmatpush1.bf16.msra.mxu0 0
      %640 = vmatprep.subr.bf16.mxu0 0
      %641 = vmatpush1.bf16.msra.mxu0 0
      %642 = vmatprep.subr.bf16.mxu0 0
      %643 = vmatpush1.bf16.msra.mxu0 0
      %644 = vmatprep.subr.bf16.mxu0 0
      %645 = vmatpush1.bf16.msra.mxu0 0
      %646 = vmatprep.subr.bf16.mxu0 0
      %647 = vmatpush1.bf16.msra.mxu0 0
      %648 = vmatprep.subr.bf16.mxu0 0
      %649 = vmatpush1.bf16.msra.mxu0 0
      %650 = vmatprep.mubr.bf16.mxu0 0
      %651 = vmatmul.mubr.bf16.gmra.mrb[0].mxu0 %v568
      %v652 = vpop.f32.mrb[0].mxu0
      %v653 = vadd.f32 %v558, %v652
      %v654 = vpop.f32.mrb[0].mxu0
      %v655 = vpop.f32.mrb[0].mxu0
      %v656 = vadd.f32 %v561, %v655
      %v657 = vpop.f32.mrb[0].mxu0
      %658 = vdwg.mxu0
      %v659 = vld [vmem:[#allocation17] sm:$0x1]
      %v661 = vlaneseq
      %v662 = vshrl.u32 %v661, 7
      %v663 = vsub.s32 0, %v662
      %v664 = vrot.slane %v659, %v663
      %v666 = vadd.f32 %v653, %v664
      %v667 = vadd.f32 %v656, %v664
      %v668 = vmax.f32 %v666, 0.0
      %v669 = vmax.f32 %v667, 0.0
      %670 = vst [vmem:[#allocation18] sm:$0xff] %v668
      %671 = vst [vmem:[#allocation18 + $0x8] sm:$0xff] %v669
    $region85: #{tpu_custom_call.1} parent=1 // pred_fallthru
      _
    // Predicated region
    $region86: #{tpu_custom_call.1} parent=1 // pred_check
      _
    $region87: #{tpu_custom_call.1} parent=1 // pred_check_branch
      %673 = sbr.rel (0) target = $region89
    $region88: #{tpu_custom_call.1} parent=1 // pred_region
      %s675 = ssub.s32 256, 256
      %676 = vsyncadd [#allocation5], %s675
      %s677 = sshll.u32 [#allocation18], 4
      %s678 = int_to_ptr.vmem [resolvable:$true] %s677
      %683 = dma.vmem_to_hbm [thread:$0]  %s678, 256, %s9, [#allocation5], 128, 128, 8
    $region89: #{tpu_custom_call.1} parent=1 // pred_fallthru
      _
    // Predicated region
    $region90: #{tpu_custom_call.1} parent=1 // pred_check
      _
    $region91: #{tpu_custom_call.1} parent=1 // pred_check_branch
      %685 = sbr.rel (0) target = $region93
    $region92: #{tpu_custom_call.1} parent=1 // pred_region
      %686 = dma.done [#allocation5], 256
    $region93: #{tpu_custom_call.1} parent=1 // pred_fallthru
      _
    %687 = vsyncpa [#allocation4], 1
    %688 = vsyncpa [#allocation7], 1
    %689 = vsyncpa [#allocation10], 1
    %690 = vsyncpa [#allocation13], 1
    %691 = vsyncpa [#allocation16], 1
    %692 = vsyncpa [#allocation5], 1

</llo_original>
